<compile_context>
chip_gen: v7x
topology: tpu7x:2x2x1
jax: 0.10.0
libtpu: 0.0.40
codegen_flags: <defaults>
</compile_context>

<pallas_src>
import math
import functools
import itertools

import numpy as np
import jax
import jax.numpy as jnp
from jax import lax
from jax.experimental import pallas as pl
from jax.experimental.pallas import tpu as pltpu

# ----------------------------------------------------------------------------
# Clifford algebra Cl(5,0) tables (metric (1,1,1,1,1)); blades ordered by grade
# ----------------------------------------------------------------------------
ALG_DIM = 5
N_BLADES = 2 ** ALG_DIM          # 32
N_GRADES = ALG_DIM + 1           # 6
EPS = 1e-6
INV_SQRT2 = 1.0 / math.sqrt(2.0)
MXU_DTYPE = jnp.bfloat16         # MXU operand dtype; elementwise math stays float32


def _build_algebra():
    combs = []
    for g in range(N_GRADES):
        combs += list(itertools.combinations(range(ALG_DIM), g))
    masks = [sum(1 << i for i in c) for c in combs]
    mask2idx = {m: i for i, m in enumerate(masks)}
    grades = np.array([bin(m).count("1") for m in masks], dtype=np.int32)

    def reorder_sign(a, b):
        s = 0
        a >>= 1
        while a:
            s += bin(a & b).count("1")
            a >>= 1
        return -1.0 if (s & 1) else 1.0

    cayley = np.zeros((N_BLADES, N_BLADES, N_BLADES), dtype=np.float32)
    for i, ma in enumerate(masks):
        for k, mb in enumerate(masks):
            j = mask2idx[ma ^ mb]
            cayley[i, j, k] = reorder_sign(ma, mb)   # Euclidean metric: all +1
    grade_start = np.array([0, 1, 6, 16, 26, 31])
    grade_size = np.array([1, 5, 10, 10, 5, 1])
    return grades, cayley, grade_start, grade_size


GRADES_NP, CAYLEY_NP, GRADE_START, GRADE_SIZE = _build_algebra()
CAYLEY = jnp.array(CAYLEY_NP)


def embed_grade(x, grade):
    start = int(GRADE_START[grade])
    size = int(GRADE_SIZE[grade])
    assert x.shape[-1] == size
    pad = [(0, 0)] * (x.ndim - 1) + [(start, N_BLADES - start - size)]
    return jnp.pad(x, pad)


# ----------------------------------------------------------------------------
# Model hyper-parameters (small but consistent with the module's __init__)
# ----------------------------------------------------------------------------
HID = 8            # hidden_features (module default 28; small for the test)
NUM_LAYERS = 2     # EGCL layers (module default 3; small for the test)
MAX_DIM = 2
NUM_NODE_TYPE = MAX_DIM + 1
NPAD = 64          # unified row padding so kernel shapes (and compiles) are shared
CO32 = HID * N_BLADES            # 256: CEMLP activation width (channel-major, blade-minor)


def _row_target(n):
    return max(NPAD, ((n + 7) // 8) * 8)


def _pad_rows(x, target):
    return jnp.pad(x, ((0, target - x.shape[0]), (0, 0)))


def _full_spec(shape):
    zero = (0,) * len(shape)
    return pl.BlockSpec(shape, lambda i, _z=zero: _z)


# ----------------------------------------------------------------------------
# Structural 0/1 constants shared by every CEMLP block (passed in once per call)
# ----------------------------------------------------------------------------
def _build_constants():
    lane = np.arange(CO32)
    ch_of = lane // N_BLADES
    gr_of = GRADES_NP[lane % N_BLADES]
    same_ch = ch_of[:, None] == ch_of[None, :]
    pool_grade = (same_ch & (gr_of[:, None] == gr_of[None, :])).astype(np.float32)
    pool_chan = same_ch.astype(np.float32)
    p = np.arange(N_BLADES * N_BLADES)
    rep_i = (p[None, :] // N_BLADES == np.arange(N_BLADES)[:, None]).astype(np.float32)
    rep_kt = (p[:, None] % N_BLADES == np.arange(N_BLADES)[None, :]).astype(np.float32)
    g0 = (lane % N_BLADES == 0).astype(np.float32)[None, :]
    return (jnp.asarray(pool_grade, MXU_DTYPE), jnp.asarray(pool_chan, MXU_DTYPE),
            jnp.asarray(rep_i, MXU_DTYPE), jnp.asarray(rep_kt, MXU_DTYPE),
            jnp.asarray(g0, jnp.float32))


POOL_GRADE, POOL_CHAN, REP_I, REP_KT, G0_MASK = _build_constants()


# ----------------------------------------------------------------------------
# Pallas kernel 1: MVLinear  (dense block-diagonal-over-blades channel mixing)
# x:(R, Cin*32)  w:(Cin*32, Cout*32) bf16  b:(1, Cout*32)  out:(R, Cout*32)
# ----------------------------------------------------------------------------
def _mvlinear_kernel(x_ref, w_ref, b_ref, o_ref):
    o_ref[...] = jnp.dot(x_ref[...].astype(MXU_DTYPE), w_ref[...],
                         preferred_element_type=jnp.float32) + b_ref[...]


@functools.lru_cache(maxsize=None)
def _get_mvlinear_call(npad, ci32, co32):
    return pl.pallas_call(
        _mvlinear_kernel,
        out_shape=jax.ShapeDtypeStruct((npad, co32), jnp.float32),
        grid=(1,),
        in_specs=[_full_spec((npad, ci32)), _full_spec((ci32, co32)),
                  _full_spec((1, co32))],
        out_specs=_full_spec((npad, co32)),
        compiler_params=pltpu.CompilerParams(dimension_semantics=("arbitrary",)),
    )


def mv_linear_flat(x, p):
    n, ci32 = x.shape
    co32 = p["w"].shape[1]
    npad = _row_target(n)
    out = _get_mvlinear_call(npad, ci32, co32)(_pad_rows(x, npad), p["w"], p["b"])
    return out[:n]


# ----------------------------------------------------------------------------
# Pallas kernel 2: fused CEMLP — grid over blocks, weights streamed per block.
# Each block:  MVLinear -> MVSiLU -> SteerableGeometricProduct -> MVLayerNorm.
# The activation is carried across blocks in a resident VMEM scratch.
# ----------------------------------------------------------------------------
@functools.lru_cache(maxsize=None)
def _get_cemlp_call(nb, k_max, co32, npad):
    assert co32 == CO32, "structural constants are built for cout == HID"
    nch = co32 // N_BLADES
    carry = nb > 1
    inv_co = 1.0 / co32

    def kernel(x_ref, w1_ref, vec_ref, wr_ref, wl_ref, wk_ref,
               pg_ref, pc_ref, ri_ref, rkt_ref, g0_ref, o_ref, act_ref):
        b = pl.program_id(0)

        @pl.when(b == 0)
        def _():
            act_ref[...] = x_ref[...].astype(MXU_DTYPE)

        vec = vec_ref[0]                       # (8, co32) f32
        b1 = vec[0:1]
        sa = vec[1:2]
        sb = vec[2:3]
        na = vec[3:4]
        bl = vec[4:5]
        la = vec[5:6]

        # 1) MVLinear: one lane-dense bf16 MXU matmul, bias on grade-0 lanes only.
        h1 = jnp.dot(act_ref[...], w1_ref[0],
                     preferred_element_type=jnp.float32) + b1

        # 2) MVSiLU: grade-wise gate (mag2 per (channel, grade); grade-0 uses raw scalar).
        g0 = g0_ref[...]
        q = jnp.dot((h1 * h1).astype(MXU_DTYPE), pg_ref[...],
                    preferred_element_type=jnp.float32)
        factor = h1 * g0 + q * (1.0 - g0)
        h2 = jax.nn.sigmoid(sa * factor + sb) * h1

        # 3) SteerableGeometricProductLayer.
        h2b = h2.astype(MXU_DTYPE)
        right = jnp.dot(h2b, wr_ref[0], preferred_element_type=jnp.float32)
        qr = jnp.dot((right * right).astype(MXU_DTYPE), pg_ref[...],
                     preferred_element_type=jnp.float32)
        norms = jax.nn.sigmoid(na) * (jnp.sqrt(qr) - 1.0) + 1.0
        right = right * pl.reciprocal(norms + EPS, approx=True)
        left = jnp.dot(h2b, wl_ref[0], preferred_element_type=jnp.float32) + bl
        rightb = right.astype(MXU_DTYPE)

        # Weighted geometric product, per channel, contracting the k index first:
        #   T[r, i*32+j] = sum_k y[r,k] * W[ch,i,j,k]        (lane-dense weight slab)
        #   gp[r, j]     = sum_i x[r,i] * T[r, i*32+j]
        # processed in two 512-lane halves to bound live vector registers.
        parts = []
        for ch in range(nch):
            xcb = h2b[:, ch * N_BLADES:(ch + 1) * N_BLADES]
            ycb = rightb[:, ch * N_BLADES:(ch + 1) * N_BLADES]
            gp_ch = None
            for hh in range(2):
                lo, hi = hh * 512, (hh + 1) * 512
                t = jnp.dot(ycb, wk_ref[0, ch, :, lo:hi],
                            preferred_element_type=jnp.float32)
                xr = jnp.dot(xcb, ri_ref[:, lo:hi],
                             preferred_element_type=jnp.float32)
                m = (t * xr).astype(MXU_DTYPE)
                d = jnp.dot(m, rkt_ref[lo:hi, :], preferred_element_type=jnp.float32)
                gp_ch = d if gp_ch is None else gp_ch + d
            parts.append(gp_ch)
        gp = jnp.concatenate(parts, axis=1)                    # (R, co32) lane-dense
        hsgp = (left + gp) * INV_SQRT2

        # 4) MVLayerNorm: per-channel L2 norm over blades, mean over channels.
        cn = jnp.sqrt(jnp.dot((hsgp * hsgp).astype(MXU_DTYPE), pc_ref[...],
                              preferred_element_type=jnp.float32))
        mean_norm = jnp.sum(cn, axis=1, keepdims=True) * inv_co + EPS
        out = la * hsgp * pl.reciprocal(mean_norm, approx=True)

        o_ref[...] = out
        if carry:                                              # feed the next block
            act_ref[:, 0:co32] = out.astype(MXU_DTYPE)

    in_specs = [
        pl.BlockSpec((npad, k_max), lambda b: (0, 0)),                       # x (once)
        pl.BlockSpec((1, k_max, co32), lambda b: (b, 0, 0)),                 # w1 stack
        pl.BlockSpec((1, 8, co32), lambda b: (b, 0, 0)),                     # per-lane params
        pl.BlockSpec((1, co32, co32), lambda b: (b, 0, 0)),                  # wr stack
        pl.BlockSpec((1, co32, co32), lambda b: (b, 0, 0)),                  # wl stack
        pl.BlockSpec((1, nch, N_BLADES, N_BLADES * N_BLADES),
                     lambda b: (b, 0, 0, 0)),                                # wk stack
        pl.BlockSpec((co32, co32), lambda b: (0, 0)),                        # pool_grade
        pl.BlockSpec((co32, co32), lambda b: (0, 0)),                        # pool_chan
        pl.BlockSpec((N_BLADES, N_BLADES * N_BLADES), lambda b: (0, 0)),     # rep_i
        pl.BlockSpec((N_BLADES * N_BLADES, N_BLADES), lambda b: (0, 0)),     # rep_k^T
        pl.BlockSpec((1, co32), lambda b: (0, 0)),                           # grade-0 mask
    ]
    return pl.pallas_call(
        kernel,
        out_shape=jax.ShapeDtypeStruct((npad, co32), jnp.float32),
        grid=(nb,),
        in_specs=in_specs,
        out_specs=pl.BlockSpec((npad, co32), lambda b: (0, 0)),
        scratch_shapes=[pltpu.VMEM((npad, k_max), MXU_DTYPE)],
        compiler_params=pltpu.CompilerParams(
            dimension_semantics=("arbitrary",),
            vmem_limit_bytes=32 * 1024 * 1024),
    )


def cemlp(x, p):
    """x: (N, cin*32) -> (N, cout*32); whole CEMLP fused into one weight-streamed call."""
    n, k0 = x.shape
    nb, k_max, co32 = (int(s) for s in p["w1"].shape)
    npad = _row_target(n)
    xp = jnp.pad(x, ((0, npad - n), (0, k_max - k0)))
    out = _get_cemlp_call(nb, k_max, co32, npad)(
        xp, p["w1"], p["vec"], p["wr"], p["wl"], p["wk"],
        POOL_GRADE, POOL_CHAN, REP_I, REP_KT, G0_MASK)
    return out[:n]


def egcl(h, edge_index, node_attr, edge_attr, p):
    src, dst = edge_index[0], edge_index[1]
    h_i, h_j = h[dst], h[src]
    msg = cemlp(jnp.concatenate([h_i - h_j, edge_attr], axis=1), p["edge_model"])
    n = h.shape[0]
    # TODO(synk): segment-mean aggregation (irregular scatter) stays in plain JAX.
    seg = jnp.asarray(dst)
    agg = jax.ops.segment_sum(msg, seg, num_segments=n)
    cnt = jax.ops.segment_sum(jnp.ones((msg.shape[0],), jnp.float32), seg, num_segments=n)
    agg = agg / jnp.maximum(cnt, 1.0)[:, None]
    upd = cemlp(jnp.concatenate([h, agg, node_attr], axis=1), p["node_model"])
    return h + upd                                               # residual


# ----------------------------------------------------------------------------
# Deterministic parameter initialization (synthetic; shapes follow the module)
# ----------------------------------------------------------------------------
def _expand_grade(p):
    """(cout, 6) per-grade params -> (1, cout*32) per-lane params."""
    return jnp.asarray(p)[:, GRADES_NP].reshape(1, -1)


def init_mvlinear_dense(key, cin, cout, subspaces=True, bias=True):
    kw, kb = jax.random.split(key)
    if subspaces:
        w = jax.random.normal(kw, (cout, cin, N_GRADES)) / math.sqrt(cin)
        w32 = w[:, :, GRADES_NP]                                   # (cout, cin, 32)
    else:
        w = jax.random.normal(kw, (cout, cin)) / math.sqrt(cin)
        w32 = jnp.broadcast_to(w[:, :, None], (cout, cin, N_BLADES))
    eye = jnp.eye(N_BLADES, dtype=jnp.float32)
    dense = jnp.einsum("dci,ij->cidj", w32, eye).reshape(cin * N_BLADES, cout * N_BLADES)
    b = jnp.zeros((1, cout * N_BLADES), jnp.float32)
    if bias:
        b = b.at[0, np.arange(cout) * N_BLADES].set(0.1 * jax.random.normal(kb, (cout,)))
    return {"w": dense.astype(MXU_DTYPE), "b": b}


def init_sgp(key, c):
    k1, k2, k3 = jax.random.split(key, 3)
    theta = jax.random.normal(k3, (c, N_GRADES, N_GRADES, N_GRADES)) / math.sqrt(N_GRADES)
    wfull = CAYLEY[None] * theta[:, GRADES_NP[:, None, None],
                                 GRADES_NP[None, :, None],
                                 GRADES_NP[None, None, :]]          # (C,32,32,32) [c,i,j,k]
    # k-contraction layout: wk[c, k, i*32 + j]  (lane-dense 1024-wide weight slabs)
    wk = jnp.transpose(wfull, (0, 3, 1, 2)).reshape(c, N_BLADES, N_BLADES * N_BLADES)
    lin_r = init_mvlinear_dense(k1, c, c, subspaces=True, bias=False)
    lin_l = init_mvlinear_dense(k2, c, c, subspaces=True, bias=True)
    return {"wr": lin_r["w"], "wl": lin_l["w"], "bl": lin_l["b"],
            "norm_a": _expand_grade(jnp.zeros((c, N_GRADES))),      # normalization_init = 0
            "wk": wk.astype(MXU_DTYPE)}


def init_cemlp(key, cin, hidden, cout, n_layers):
    blocks = []
    fan_in = cin
    for i in range(n_layers):
        f_out = cout if i == n_layers - 1 else hidden
        key, k1, k2 = jax.random.split(key, 3)
        lin = init_mvlinear_dense(k1, fan_in, f_out, subspaces=True, bias=True)
        blk = {"w1": lin["w"], "b1": lin["b"],
               "silu_a": _expand_grade(jnp.ones((f_out, N_GRADES))),
               "silu_b": _expand_grade(jnp.zeros((f_out, N_GRADES))),
               "ln_a": jnp.ones((1, f_out * N_BLADES), jnp.float32)}
        blk.update(init_sgp(k2, f_out))
        blocks.append(blk)
        fan_in = f_out

    # ---- stack per-block weights along a leading axis (streamed by the fused kernel)
    co32 = cout * N_BLADES
    k_max = max(blk["w1"].shape[0] for blk in blocks)
    w1s = jnp.stack([jnp.pad(blk["w1"], ((0, k_max - blk["w1"].shape[0]), (0, 0)))
                     for blk in blocks])
    vecs = jnp.stack([jnp.concatenate(
        [blk["b1"], blk["silu_a"], blk["silu_b"], blk["norm_a"], blk["bl"], blk["ln_a"],
         jnp.zeros((2, co32), jnp.float32)], axis=0) for blk in blocks])
    return {"w1": w1s.astype(MXU_DTYPE),
            "vec": vecs.astype(jnp.float32),
            "wr": jnp.stack([blk["wr"] for blk in blocks]),
            "wl": jnp.stack([blk["wl"] for blk in blocks]),
            "wk": jnp.stack([blk["wk"] for blk in blocks])}


def init_egcl(key, hid):
    k1, k2 = jax.random.split(key)
    return {"edge_model": init_cemlp(k1, hid + 2 * NUM_NODE_TYPE, hid, hid, 2),
            "node_model": init_cemlp(k2, hid + hid + NUM_NODE_TYPE, hid, hid, 2)}


def init_model(key):
    keys = jax.random.split(key, 4 + NUM_LAYERS)
    embed = [init_mvlinear_dense(keys[0], 1, HID, subspaces=False, bias=True)]
    for d in range(1, MAX_DIM + 1):
        embed.append(init_cemlp(keys[d], (d + 1) * 1, HID, HID, n_layers=d))
    layers = [init_egcl(keys[3 + l], HID) for l in range(NUM_LAYERS)]
    projection = init_mvlinear_dense(keys[3 + NUM_LAYERS], HID, 1, subspaces=True, bias=True)
    return {"embed": embed, "layers": layers, "projection": projection}


# ----------------------------------------------------------------------------
# Full forward pass (mirrors HullsCliffordSharedSimplicialMPNN.forward)
# ----------------------------------------------------------------------------
def model_forward(params, batch):
    ptr = batch["ptr"]
    bsz = len(ptr) - 1
    node_types = batch["node_types"]
    inp = batch["input"]

    # center 0-simplex (vertex) positions per graph
    vert_rows = np.where(node_types == 0)[0]
    node_pos = inp[vert_rows].reshape(bsz, -1, ALG_DIM)
    node_pos = node_pos - node_pos.mean(axis=1, keepdims=True)
    inp = inp.at[vert_rows].set(node_pos.reshape(-1, ALG_DIM))

    # ---- embed_simplicial_complex ----
    start = batch["x_ind_ptr"][:-1][batch["x_ind_batch"]]
    simplex_indices = batch["x_ind"] + start[:, None]
    n_total = len(node_types)
    h = jnp.zeros((n_total, HID * N_BLADES), jnp.float32)
    for d in range(MAX_DIM + 1):
        rows = np.where(node_types == d)[0]
        d_simplices = simplex_indices[rows, : d + 1]
        pos = inp[d_simplices]                                           # (nd, d+1, 5)
        perms = np.array(list(itertools.permutations(range(d + 1))))
        fct = math.factorial(d + 1)
        # TODO(synk): permutation gather (irregular indexing) kept in plain JAX.
        pos = pos[:, perms, :].reshape(len(rows) * fct, d + 1, ALG_DIM)
        feat = embed_grade(pos, 1).reshape(len(rows) * fct, (d + 1) * N_BLADES)
        emb = (mv_linear_flat(feat, params["embed"][0]) if d == 0
               else cemlp(feat, params["embed"][d]))
        emb = emb.reshape(len(rows), fct, HID * N_BLADES).sum(axis=1)
        h = h.at[rows].set(emb)

    # ---- embed_simplex_types ----
    node_attr3 = embed_grade(jax.nn.one_hot(jnp.array(node_types), NUM_NODE_TYPE)[:, :, None], 0)
    node_attr = node_attr3.reshape(n_total, NUM_NODE_TYPE * N_BLADES)
    ei = batch["edge_index"]
    edge_attr = jnp.concatenate([node_attr[ei[0]], node_attr[ei[1]]], axis=1)

    # ---- message passing + projection ----
    for lp in params["layers"]:
        h = egcl(h, ei, node_attr, edge_attr, lp)
    proj = mv_linear_flat(h, params["projection"])                       # (N, 32)
    pred = proj[:, 0:1]                                                  # grade-0 component

    seg = jnp.array(batch["x_ind_batch"])
    pooled = jax.ops.segment_sum(pred, seg, num_segments=bsz)
    cnt = jax.ops.segment_sum(jnp.ones((n_total, 1), jnp.float32), seg, num_segments=bsz)
    pred_g = (pooled / cnt).squeeze(-1)                                  # global_mean_pool
    loss = (pred_g - batch["target"]) ** 2                               # per-graph MSE
    return loss.mean(0), loss


# ----------------------------------------------------------------------------
# Deterministic synthetic simplicial-complex batch (2 graphs)
# ----------------------------------------------------------------------------
def make_batch(key):
    verts = 5
    base_edges = [(0, 1), (1, 2), (2, 3), (3, 4), (4, 0), (0, 2)]
    base_tris = [(0, 1, 2), (2, 3, 4)]
    per_graph = verts + len(base_edges) + len(base_tris)                 # 13 simplices / graph
    bsz = 2

    x_ind, node_types, x_ind_batch, mp_src, mp_dst = [], [], [], [], []
    for g in range(bsz):
        off = g * per_graph
        for v in range(verts):
            x_ind.append([v, 0, 0]); node_types.append(0); x_ind_batch.append(g)
        for e, (a, b) in enumerate(base_edges):
            x_ind.append([a, b, 0]); node_types.append(1); x_ind_batch.append(g)
            eidx = off + verts + e
            for v in (a, b):
                mp_src += [off + v, eidx]
                mp_dst += [eidx, off + v]
        for (a, b, c) in base_tris:
            x_ind.append([a, b, c]); node_types.append(2); x_ind_batch.append(g)

    x_ind = np.array(x_ind, dtype=np.int64)
    node_types = np.array(node_types, dtype=np.int64)
    x_ind_batch = np.array(x_ind_batch, dtype=np.int64)
    ptr = np.array([0, per_graph, 2 * per_graph], dtype=np.int64)
    edge_index = np.stack([np.array(mp_src), np.array(mp_dst)]).astype(np.int64)

    n_total = len(node_types)
    k_pos, k_tgt = jax.random.split(key)
    inp = jnp.zeros((n_total, ALG_DIM), jnp.float32)
    vert_rows = np.where(node_types == 0)[0]
    inp = inp.at[vert_rows].set(jax.random.normal(k_pos, (len(vert_rows), ALG_DIM)))
    target = jax.random.normal(k_tgt, (bsz,))
    return {"input": inp, "node_types": node_types, "x_ind": x_ind,
            "x_ind_batch": x_ind_batch, "x_ind_ptr": ptr, "ptr": ptr,
            "edge_index": edge_index, "target": target}


if __name__ == "__main__":
    key = jax.random.PRNGKey(0)
    k_model, k_data = jax.random.split(key)
    params = init_model(k_model)
    batch = make_batch(k_data)
    backprop_loss, per_graph_loss = model_forward(params, batch)
    backprop_loss = jax.block_until_ready(backprop_loss)
    per_graph_loss = jax.block_until_ready(per_graph_loss)
    assert per_graph_loss.shape == (2,)
    assert bool(jnp.isfinite(backprop_loss))
    print("KERNEL_OK")
</pallas_src>

<mosaic_0001>
module attributes {stable_mosaic.version = 11 : i64} {
  func.func @_mvlinear_kernel(%arg0: i32, %arg1: memref<64x32xf32, #tpu.memory_space<vmem>>, %arg2: memref<32x256xbf16, #tpu.memory_space<vmem>>, %arg3: memref<1x256xf32, #tpu.memory_space<vmem>>, %arg4: memref<64x256xf32, #tpu.memory_space<vmem>>) attributes {dimension_semantics = [#tpu.dimension_semantics<arbitrary>], iteration_bounds = array<i64: 1>, scalar_prefetch = 0 : i64, scratch_operands = 0 : i64, tpu.core_type = #tpu.core_type<tc>, window_params = [{pipeline_mode = #tpu.pipeline_mode<synchronous>, transform_indices = @transform_0, window_bounds = array<i64: 64, 32>}, {pipeline_mode = #tpu.pipeline_mode<synchronous>, transform_indices = @transform_1, window_bounds = array<i64: 32, 256>}, {pipeline_mode = #tpu.pipeline_mode<synchronous>, transform_indices = @transform_2, window_bounds = array<i64: 1, 256>}, {pipeline_mode = #tpu.pipeline_mode<synchronous>, transform_indices = @transform_3, window_bounds = array<i64: 64, 256>}]} {
    %c0 = arith.constant 0 : index
    %c0_0 = arith.constant 0 : index
    %0 = vector.load %arg1[%c0, %c0_0] : memref<64x32xf32, #tpu.memory_space<vmem>>, vector<64x32xf32>
    %1 = arith.truncf %0 : vector<64x32xf32> to vector<64x32xbf16>
    %c0_1 = arith.constant 0 : index
    %c0_2 = arith.constant 0 : index
    %2 = vector.load %arg2[%c0_1, %c0_2] : memref<32x256xbf16, #tpu.memory_space<vmem>>, vector<32x256xbf16>
    %cst = arith.constant dense<0.000000e+00> : vector<64x256xf32>
    %3 = tpu.matmul %1, %2, %cst {dimension_numbers = #tpu.dot_dimension_numbers<[1], [0], [0], [1], [0, 0, 1, 1], [], []>} : vector<64x32xbf16>, vector<32x256xbf16>, vector<64x256xf32> -> vector<64x256xf32>
    %c0_3 = arith.constant 0 : index
    %c0_4 = arith.constant 0 : index
    %4 = vector.load %arg3[%c0_3, %c0_4] : memref<1x256xf32, #tpu.memory_space<vmem>>, vector<1x256xf32>
    %5 = vector.broadcast %4 : vector<1x256xf32> to vector<64x256xf32>
    %6 = arith.addf %3, %5 : vector<64x256xf32>
    %c0_5 = arith.constant 0 : index
    %c0_6 = arith.constant 0 : index
    %7 = vector.load %arg4[%c0_5, %c0_6] : memref<64x256xf32, #tpu.memory_space<vmem>>, vector<64x256xf32>
    tpu.vector_store %arg4[%c0_5, %c0_6], %6 {strides = array<i32>} : memref<64x256xf32, #tpu.memory_space<vmem>>, vector<64x256xf32>,
    return
  }
  func.func @transform_0(%arg0: i32) -> (i32, i32) {
    %c0_i32 = arith.constant 0 : i32
    %c0_i32_0 = arith.constant 0 : i32
    %c0_i32_1 = arith.constant 0 : i32
    return %c0_i32, %c0_i32_0 : i32, i32
  }
  func.func @transform_1(%arg0: i32) -> (i32, i32) {
    %c0_i32 = arith.constant 0 : i32
    %c0_i32_0 = arith.constant 0 : i32
    %c0_i32_1 = arith.constant 0 : i32
    return %c0_i32, %c0_i32_0 : i32, i32
  }
  func.func @transform_2(%arg0: i32) -> (i32, i32) {
    %c0_i32 = arith.constant 0 : i32
    %c0_i32_0 = arith.constant 0 : i32
    %c0_i32_1 = arith.constant 0 : i32
    return %c0_i32, %c0_i32_0 : i32, i32
  }
  func.func @transform_3(%arg0: i32) -> (i32, i32) {
    %c0_i32 = arith.constant 0 : i32
    %c0_i32_0 = arith.constant 0 : i32
    %c0_i32_1 = arith.constant 0 : i32
    return %c0_i32, %c0_i32_0 : i32, i32
  }
}

</mosaic_0001>

<llo_original>
// kernel: tpu_custom_call.1
$region0: #{tpu_custom_call.1}
  #allocation0 [shape = 'u32[]', space=smem, size = 0x4, offset = 0x4, fixed_abs, tag = 'smem constant byte address 0x4 - core index']
  #allocation1 [shape = 'u32[144,128]{1,0:T(1,128)}', space=vmem, size = 0x12000, scoped, tag = 'internal scratch']
  %s0 = inlined_call_operand.vmem [shape: f32[64,32], index: 0, kind: input, shape index: {}]
  %s1 = inlined_call_operand.vmem [shape: bf16[32,256], index: 1, kind: input, shape index: {}]
  %s2 = inlined_call_operand.vmem [shape: f32[1,256], index: 2, kind: input, shape index: {}]
  %s3 = inlined_call_operand.hbm [shape: f32[64,256], index: 3, kind: output, shape index: {}]
  %s4 = sld [smem:[#allocation0]]
  $region22: #{tpu_custom_call.1} parent=0
    _
  %s6 = ssub.s32 1, %s4
  %s7 = scalar_select 0, %s6, %s4
  $region1: #{tpu_custom_call.1} parent=0
    #allocation2 [shape = 'u8[65536]{0}', space=vmem, size = 0x10000, scoped, tag = 'output window, operand 0, single buffered']
    #allocation3 [shape = 's32[1]{0}', space=sflag, size = 0x4, scoped, tag = 'scoped memory for tpu_custom_call.1']
    %8 = vsyncpa [#allocation3], 0
    // Predicated region
    $region2: #{tpu_custom_call.1} parent=1 // pred_check
      _
    $region3: #{tpu_custom_call.1} parent=1 // pred_check_branch
      %10 = sbr.rel (0) target = $region5
    $region4: #{tpu_custom_call.1} parent=1 // pred_region
      _
    $region5: #{tpu_custom_call.1} parent=1 // pred_fallthru
      _
    // Predicated region
    $region6: #{tpu_custom_call.1} parent=1 // pred_check
      _
    $region7: #{tpu_custom_call.1} parent=1 // pred_check_branch
      %12 = sbr.rel (0) target = $region9
    $region8: #{tpu_custom_call.1} parent=1 // pred_region
      _
    $region9: #{tpu_custom_call.1} parent=1 // pred_fallthru
      _
    // Predicated region
    $region10: #{tpu_custom_call.1} parent=1 // pred_check
      _
    $region11: #{tpu_custom_call.1} parent=1 // pred_check_branch
      %14 = sbr.rel (0) target = $region13
    $region12: #{tpu_custom_call.1} parent=1 // pred_region
      _
    $region13: #{tpu_custom_call.1} parent=1 // pred_fallthru
      _
    %v16 = vld [vmem:[%s0] sm:$0xff]
    %v17 = vld [vmem:[%s0 + $0x8] sm:$0xff]
    %v18 = vld [vmem:[%s0 + $0x10] sm:$0xff]
    %v19 = vld [vmem:[%s0 + $0x18] sm:$0xff]
    %v20 = vld [vmem:[%s0 + $0x20] sm:$0xff]
    %v21 = vld [vmem:[%s0 + $0x28] sm:$0xff]
    %v22 = vld [vmem:[%s0 + $0x30] sm:$0xff]
    %v23 = vld [vmem:[%s0 + $0x38] sm:$0xff]
    %v24 = vpack.c.bf16 %v17, %v16
    %v25 = vpack.c.bf16 %v19, %v18
    %v26 = vpack.c.bf16 %v21, %v20
    %v27 = vpack.c.bf16 %v23, %v22
    %v28 = vld [vmem:[%s1] sm:$0xff]
    %v29 = vld [vmem:[%s1 + $0x8] sm:$0xff]
    %v30 = vld [vmem:[%s1 + $0x10] sm:$0xff]
    %v31 = vld [vmem:[%s1 + $0x18] sm:$0xff]
    %v32 = vld [vmem:[%s2] sm:$0x3]
    %v34 = vlaneseq
    %v35 = vshrl.u32 %v34, 7
    %v36 = vsub.s32 0, %v35
    %v37 = vrot.slane %v32, %v36
    %v38 = vlaneseq
    %v39 = vshrl.u32 %v38, 7
    %v40 = vsub.s32 1, %v39
    %v41 = vrot.slane %v32, %v40
    %v48 = vunpack.c.l.b16 %v28
    %v49 = vunpack.c.h.b16 %v28
    %v50 = vunpack.c.l.b16 %v29
    %v51 = vunpack.c.h.b16 %v29
    %v52 = vunpack.c.l.b16 %v30
    %v53 = vunpack.c.h.b16 %v30
    %v54 = vunpack.c.l.b16 %v31
    %v55 = vunpack.c.h.b16 %v31
    %v56 = vpack.c.b16 %v50, %v48
    %v57 = vpack.c.b16 %v51, %v49
    %v58 = vpack.c.b16 %v54, %v52
    %v59 = vpack.c.b16 %v55, %v53
    %vm64 = vcmask 261120
    %v66 = vsel %vm64, %v24, 0
    %v69 = vsel %vm64, %v25, 0
    %v72 = vsel %vm64, %v26, 0
    %v75 = vsel %vm64, %v27, 0
    %77 = vmatprep.subr.bf16.mxu0 %v57
    %78 = vmatpush1.bf16.msra.mxu0 %v56
    %79 = vmatprep.subr.bf16.mxu0 %v59
    %80 = vmatpush1.bf16.msra.mxu0 %v58
    %81 = vmatprep.subr.bf16.mxu0 0
    %82 = vmatpush1.bf16.msra.mxu0 0
    %83 = vmatprep.subr.bf16.mxu0 0
    %84 = vmatpush1.bf16.msra.mxu0 0
    %85 = vmatprep.subr.bf16.mxu0 0
    %86 = vmatpush1.bf16.msra.mxu0 0
    %87 = vmatprep.subr.bf16.mxu0 0
    %88 = vmatpush1.bf16.msra.mxu0 0
    %89 = vmatprep.subr.bf16.mxu0 0
    %90 = vmatpush1.bf16.msra.mxu0 0
    %91 = vmatprep.subr.bf16.mxu0 0
    %92 = vmatpush1.bf16.msra.mxu0 0
    %93 = vmatprep.subr.bf16.mxu0 0
    %94 = vmatpush1.bf16.msra.mxu0 0
    %95 = vmatprep.subr.bf16.mxu0 0
    %96 = vmatpush1.bf16.msra.mxu0 0
    %97 = vmatprep.subr.bf16.mxu0 0
    %98 = vmatpush1.bf16.msra.mxu0 0
    %99 = vmatprep.subr.bf16.mxu0 0
    %100 = vmatpush1.bf16.msra.mxu0 0
    %101 = vmatprep.subr.bf16.mxu0 0
    %102 = vmatpush1.bf16.msra.mxu0 0
    %103 = vmatprep.subr.bf16.mxu0 0
    %104 = vmatpush1.bf16.msra.mxu0 0
    %105 = vmatprep.subr.bf16.mxu0 0
    %106 = vmatpush1.bf16.msra.mxu0 0
    %107 = vmatprep.subr.bf16.mxu0 0
    %108 = vmatpush1.bf16.msra.mxu0 0
    %109 = vmatprep.mubr.bf16.mxu0 0
    %110 = vmatmul.mubr.bf16.gmra.mrb[0].mxu0 %v66
    %v111 = vpop.f32.mrb[0].mxu0
    %v112 = vadd.f32 %v37, %v111
    %v113 = vpop.f32.mrb[0].mxu0
    %v114 = vadd.f32 %v41, %v113
    %v115 = vpop.f32.mrb[0].mxu0
    %v116 = vadd.f32 %v37, %v115
    %v117 = vpop.f32.mrb[0].mxu0
    %v118 = vadd.f32 %v41, %v117
    %119 = vmatprep.mubr.bf16.mxu0 0
    %120 = vmatmul.mubr.bf16.gmra.mrb[0].mxu0 %v69
    %v121 = vpop.f32.mrb[0].mxu0
    %v122 = vadd.f32 %v37, %v121
    %v123 = vpop.f32.mrb[0].mxu0
    %v124 = vadd.f32 %v41, %v123
    %v125 = vpop.f32.mrb[0].mxu0
    %v126 = vadd.f32 %v37, %v125
    %v127 = vpop.f32.mrb[0].mxu0
    %v128 = vadd.f32 %v41, %v127
    %129 = vmatprep.mubr.bf16.mxu0 0
    %130 = vmatmul.mubr.bf16.gmra.mrb[0].mxu0 %v72
    %v131 = vpop.f32.mrb[0].mxu0
    %v132 = vadd.f32 %v37, %v131
    %v133 = vpop.f32.mrb[0].mxu0
    %v134 = vadd.f32 %v41, %v133
    %v135 = vpop.f32.mrb[0].mxu0
    %v136 = vadd.f32 %v37, %v135
    %v137 = vpop.f32.mrb[0].mxu0
    %v138 = vadd.f32 %v41, %v137
    %139 = vmatprep.mubr.bf16.mxu0 0
    %140 = vmatmul.mubr.bf16.gmra.mrb[0].mxu0 %v75
    %v141 = vpop.f32.mrb[0].mxu0
    %v142 = vadd.f32 %v37, %v141
    %v143 = vpop.f32.mrb[0].mxu0
    %v144 = vadd.f32 %v41, %v143
    %v145 = vpop.f32.mrb[0].mxu0
    %v146 = vadd.f32 %v37, %v145
    %v147 = vpop.f32.mrb[0].mxu0
    %v148 = vadd.f32 %v41, %v147
    %149 = vdwg.mxu0
    %150 = vst [vmem:[#allocation2] sm:$0xff] %v112
    %151 = vst [vmem:[#allocation2 + $0x8] sm:$0xff] %v114
    %152 = vst [vmem:[#allocation2 + $0x10] sm:$0xff] %v116
    %153 = vst [vmem:[#allocation2 + $0x18] sm:$0xff] %v118
    %154 = vst [vmem:[#allocation2 + $0x20] sm:$0xff] %v122
    %155 = vst [vmem:[#allocation2 + $0x28] sm:$0xff] %v124
    %156 = vst [vmem:[#allocation2 + $0x30] sm:$0xff] %v126
    %157 = vst [vmem:[#allocation2 + $0x38] sm:$0xff] %v128
    %158 = vst [vmem:[#allocation2 + $0x40] sm:$0xff] %v132
    %159 = vst [vmem:[#allocation2 + $0x48] sm:$0xff] %v134
    %160 = vst [vmem:[#allocation2 + $0x50] sm:$0xff] %v136
    %161 = vst [vmem:[#allocation2 + $0x58] sm:$0xff] %v138
    %162 = vst [vmem:[#allocation2 + $0x60] sm:$0xff] %v142
    %163 = vst [vmem:[#allocation2 + $0x68] sm:$0xff] %v144
    %164 = vst [vmem:[#allocation2 + $0x70] sm:$0xff] %v146
    %165 = vst [vmem:[#allocation2 + $0x78] sm:$0xff] %v148
    // Predicated region
    $region14: #{tpu_custom_call.1} parent=1 // pred_check
      _
    $region15: #{tpu_custom_call.1} parent=1 // pred_check_branch
      %167 = sbr.rel (0) target = $region17
    $region16: #{tpu_custom_call.1} parent=1 // pred_region
      %s169 = ssub.s32 2048, 2048
      %170 = vsyncadd [#allocation3], %s169
      %s171 = sshll.u32 [#allocation2], 4
      %s172 = int_to_ptr.vmem [resolvable:$true] %s171
      %177 = dma.vmem_to_hbm [thread:$0]  %s172, 2048, %s3, [#allocation3], 256, 256, 16
    $region17: #{tpu_custom_call.1} parent=1 // pred_fallthru
      _
    // Predicated region
    $region18: #{tpu_custom_call.1} parent=1 // pred_check
      _
    $region19: #{tpu_custom_call.1} parent=1 // pred_check_branch
      %179 = sbr.rel (0) target = $region21
    $region20: #{tpu_custom_call.1} parent=1 // pred_region
      %180 = dma.done [#allocation3], 2048
    $region21: #{tpu_custom_call.1} parent=1 // pred_fallthru
      _
    %181 = vsyncpa [#allocation3], 1

</llo_original>
